<compile_context>
chip_gen: v7x
topology: tpu7x:2x2x1
jax: 0.10.0
libtpu: 0.0.40
codegen_flags: <defaults>
</compile_context>

<pallas_src>
import functools
import math

import jax
import jax.numpy as jnp
from jax.experimental import pallas as pl
from jax.experimental.pallas import tpu as pltpu


_IN_FEATURES = 10
_LAYER_DIMS = [10, 8, 6, 4, 2, 1]

# Padded VMEM footprint: the 10-wide (and 1-wide) f32 last dim is lane-padded to
# 128 -> 512 B per row per buffer; input + output, each double-buffered by the
# BlockSpec pipeline -> ~TB * 2048 B total.  TB=8192 -> ~16 MiB, inside the
# 32 MiB scoped-VMEM limit requested below on every TPU generation (v5e/v6e
# have 128 MiB physical, v7x has 64 MiB).
_TB_CAP = 8192
_VMEM_LIMIT_BYTES = 32 * 1024 * 1024
_SMALL_BATCH_XLA_CUTOFF = 2048


def _round_up(n, m):
    return ((n + m - 1) // m) * m


def _cdiv(a, b):
    return -(-a // b)


def affine_kernel(x_ref, w_ref, b_ref, o_ref):
    """One batch tile: (TB, 10) @ (10, 1) + scalar bias -> (TB, 1)."""
    y = jnp.dot(x_ref[...], w_ref[...], preferred_element_type=jnp.float32)
    o_ref[...] = (y + b_ref[0, 0]).astype(o_ref.dtype)


def _choose_tiling(B):
    """Pick (TB, n_blocks, Bp): fewest grid steps that fit VMEM, minimal padding.

    - TB sized to the VMEM budget (_TB_CAP), not an arbitrary 1024 cap.
    - Padding only to n_blocks * round_up(ceil(B/n_blocks), 8): at most
      8*n_blocks dead rows, never a whole tile.
    - For large batches keep n_blocks >= 2 and even so the "parallel" axis can
      be sharded across v7x's two TensorCores.
    """
    n_blocks = max(1, _cdiv(B, _TB_CAP))
    if B >= 2 * 1024:
        n_blocks = max(n_blocks, 2)
        if n_blocks % 2:
            n_blocks += 1
    TB = _round_up(_cdiv(B, n_blocks), 8)
    Bp = n_blocks * TB
    return TB, n_blocks, Bp


def _pallas_affine(x_flat, W_eff, b_eff):
    B = x_flat.shape[0]
    TB, n_blocks, Bp = _choose_tiling(B)
    if Bp != B:
        x_flat = jnp.pad(x_flat, ((0, Bp - B), (0, 0)))

    out = pl.pallas_call(
        affine_kernel,
        out_shape=jax.ShapeDtypeStruct((Bp, 1), jnp.float32),
        grid=(n_blocks,),
        in_specs=[
            pl.BlockSpec((TB, _IN_FEATURES), lambda i: (i, 0)),   # x batch tile
            pl.BlockSpec((_IN_FEATURES, 1), lambda i: (0, 0)),    # W_eff (resident)
            pl.BlockSpec(memory_space=pltpu.MemorySpace.SMEM),    # b_eff scalar
        ],
        out_specs=pl.BlockSpec((TB, 1), lambda i: (i, 0)),
        compiler_params=pltpu.CompilerParams(
            dimension_semantics=("parallel",),
            vmem_limit_bytes=_VMEM_LIMIT_BYTES,
        ),
    )(x_flat, W_eff, b_eff)
    return out[:B]


@functools.partial(jax.jit, static_argnames=("force_pallas",))
def neural_network_forward(x, *params, force_pallas=False):
    # nn.Flatten(start_dim=1)
    B = x.shape[0]
    x_flat = x.reshape(B, -1).astype(jnp.float32)
    assert x_flat.shape[1] == _IN_FEATURES, "first Linear expects 10 input features"

    # Compose the affine chain once (tiny matmuls, done by XLA outside the kernel).
    W_eff = params[0]
    b_eff = params[1]
    for i in range(1, 5):
        W, b = params[2 * i], params[2 * i + 1]
        W_eff = W_eff @ W            # (10, fan_out)
        b_eff = b_eff @ W + b        # (1, fan_out)
    # W_eff: (10, 1), b_eff: (1, 1)

    if force_pallas or B >= _SMALL_BATCH_XLA_CUTOFF:
        return _pallas_affine(x_flat, W_eff, b_eff)
    # Tiny batch: the whole op is sub-µs of work; a fused XLA dot beats the
    # pallas_call launch cost.
    return x_flat @ W_eff + b_eff


def init_params(key):
    """Deterministic init matching PyTorch nn.Linear default U(-1/sqrt(fan_in), +).

    Weights stored (in_features, out_features) so y = x @ W + b matches
    PyTorch's y = x @ W.T + b.
    """
    params = []
    for i in range(5):
        fan_in, fan_out = _LAYER_DIMS[i], _LAYER_DIMS[i + 1]
        key, kw, kb = jax.random.split(key, 3)
        bound = 1.0 / math.sqrt(fan_in)
        W = jax.random.uniform(kw, (fan_in, fan_out), jnp.float32, -bound, bound)
        b = jax.random.uniform(kb, (1, fan_out), jnp.float32, -bound, bound)
        params.extend([W, b])
    return params


def reference_forward(x, params):
    """Plain-JAX layer-by-layer reference (matches the PyTorch module exactly)."""
    B = x.shape[0]
    h = x.reshape(B, -1).astype(jnp.float32)
    for i in range(5):
        W, b = params[2 * i], params[2 * i + 1]
        h = h @ W + b
    return h


if __name__ == "__main__":
    key = jax.random.PRNGKey(0)
    key, kx = jax.random.split(key)

    # Small input consistent with the module: flattens to 10 features.
    batch = 8
    x = jax.random.normal(kx, (batch, 2, 5), dtype=jnp.float32)

    params = init_params(key)

    # Force the Pallas path so the kernel is actually exercised at this small batch.
    out = neural_network_forward(x, *params, force_pallas=True)
    out = jax.block_until_ready(out)

    ref = reference_forward(x, params)
    assert out.shape == (batch, 1)
    assert jnp.allclose(out, ref, atol=1e-5, rtol=1e-5), "mismatch vs reference"

    print("KERNEL_OK")
</pallas_src>

<mosaic_0001>
module attributes {stable_mosaic.version = 11 : i64} {
  func.func @affine_kernel(%arg0: i32, %arg1: memref<8x10xf32, #tpu.memory_space<vmem>>, %arg2: memref<10x1xf32, #tpu.memory_space<vmem>>, %arg3: memref<1x1xf32, #tpu.memory_space<smem>>, %arg4: memref<8x1xf32, #tpu.memory_space<vmem>>) attributes {dimension_semantics = [#tpu.dimension_semantics<parallel>], iteration_bounds = array<i64: 1>, scalar_prefetch = 0 : i64, scratch_operands = 0 : i64, tpu.core_type = #tpu.core_type<tc>, window_params = [{transform_indices = @transform_0, window_bounds = array<i64: 8, 10>}, {pipeline_mode = #tpu.pipeline_mode<synchronous>, transform_indices = @transform_1, window_bounds = array<i64: 10, 1>}, {transform_indices = @transform_2, window_bounds = array<i64: 1, 1>}, {transform_indices = @transform_3, window_bounds = array<i64: 8, 1>}]} {
    %c0 = arith.constant 0 : index
    %c0_0 = arith.constant 0 : index
    %0 = vector.load %arg1[%c0, %c0_0] : memref<8x10xf32, #tpu.memory_space<vmem>>, vector<8x10xf32>
    %c0_1 = arith.constant 0 : index
    %c0_2 = arith.constant 0 : index
    %1 = vector.load %arg2[%c0_1, %c0_2] : memref<10x1xf32, #tpu.memory_space<vmem>>, vector<10x1xf32>
    %cst = arith.constant dense<0.000000e+00> : vector<8x1xf32>
    %2 = tpu.matmul %0, %1, %cst {dimension_numbers = #tpu.dot_dimension_numbers<[1], [0], [0], [1], [0, 0, 1, 1], [], []>} : vector<8x10xf32>, vector<10x1xf32>, vector<8x1xf32> -> vector<8x1xf32>
    %c0_3 = arith.constant 0 : index
    %c0_4 = arith.constant 0 : index
    %3 = memref.load %arg3[%c0_3, %c0_4] : memref<1x1xf32, #tpu.memory_space<smem>>
    %4 = vector.broadcast %3 : f32 to vector<8x1xf32>
    %5 = arith.addf %2, %4 : vector<8x1xf32>
    %c0_5 = arith.constant 0 : index
    %c0_6 = arith.constant 0 : index
    %6 = vector.load %arg4[%c0_5, %c0_6] : memref<8x1xf32, #tpu.memory_space<vmem>>, vector<8x1xf32>
    tpu.vector_store %arg4[%c0_5, %c0_6], %5 {strides = array<i32>} : memref<8x1xf32, #tpu.memory_space<vmem>>, vector<8x1xf32>,
    return
  }
  func.func @transform_0(%arg0: i32) -> (i32, i32) {
    %c0_i32 = arith.constant 0 : i32
    %c0_i32_0 = arith.constant 0 : i32
    return %arg0, %c0_i32 : i32, i32
  }
  func.func @transform_1(%arg0: i32) -> (i32, i32) {
    %c0_i32 = arith.constant 0 : i32
    %c0_i32_0 = arith.constant 0 : i32
    %c0_i32_1 = arith.constant 0 : i32
    return %c0_i32, %c0_i32_0 : i32, i32
  }
  func.func @transform_2(%arg0: i32) -> (i32, i32) {
    %c0_i32 = arith.constant 0 : i32
    %c0_i32_0 = arith.constant 0 : i32
    %c0_i32_1 = arith.constant 0 : i32
    return %c0_i32, %c0_i32_0 : i32, i32
  }
  func.func @transform_3(%arg0: i32) -> (i32, i32) {
    %c0_i32 = arith.constant 0 : i32
    %c0_i32_0 = arith.constant 0 : i32
    return %arg0, %c0_i32 : i32, i32
  }
}

</mosaic_0001>

<llo_original>
// kernel: neural_network_forward.1
$region0: #{neural_network_forward.1}
  #allocation0 [shape = 'u32[]', space=smem, size = 0x4, offset = 0x4, fixed_abs, tag = 'smem constant byte address 0x4 - core index']
  #allocation1 [shape = 'u32[144,128]{1,0:T(1,128)}', space=vmem, size = 0x12000, scoped, tag = 'internal scratch']
  #allocation2 [shape = 'f32[1,1]{1,0:T(1,128)S(6)}', space=smem, size = 0x200, scoped, tag = 'scoped memory for neural_network_forward.1']
  %s0 = inlined_call_operand.vmem [shape: f32[8,10], index: 0, kind: input, shape index: {}]
  %s1 = inlined_call_operand.vmem [shape: f32[10,1], index: 1, kind: input, shape index: {}]
  %s2 = inlined_call_operand.<no memory space> [shape: f32[1,1], index: 2, kind: input, shape index: {}]
  %s3 = inlined_call_operand.vmem [shape: f32[8,1], index: 3, kind: output, shape index: {}]
  %s4 = sld [smem:[#allocation0]]
  $region22: #{neural_network_forward.1} parent=0
    _
  %s6 = ssub.s32 1, %s4
  %s7 = scalar_select 0, %s6, %s4
  %8 = sst [smem:[#allocation2]] %s2
  // Predicated region
  $region2: #{neural_network_forward.1} parent=0 // pred_check
    _
  $region3: #{neural_network_forward.1} parent=0 // pred_check_branch
    %10 = sbr.rel (0) target = $region5
  $region4: #{neural_network_forward.1} parent=0 // pred_region
    _
  $region5: #{neural_network_forward.1} parent=0 // pred_fallthru
    _
  // Predicated region
  $region6: #{neural_network_forward.1} parent=0 // pred_check
    _
  $region7: #{neural_network_forward.1} parent=0 // pred_check_branch
    %12 = sbr.rel (0) target = $region9
  $region8: #{neural_network_forward.1} parent=0 // pred_region
    _
  $region9: #{neural_network_forward.1} parent=0 // pred_fallthru
    _
  // Predicated region
  $region10: #{neural_network_forward.1} parent=0 // pred_check
    _
  $region11: #{neural_network_forward.1} parent=0 // pred_check_branch
    %14 = sbr.rel (0) target = $region13
  $region12: #{neural_network_forward.1} parent=0 // pred_region
    _
  $region13: #{neural_network_forward.1} parent=0 // pred_fallthru
    _
  %v15 = vld [vmem:[%s0] sm:$0xff]
  %v16 = vld [vmem:[%s1] sm:$0xff]
  %v17 = vld [vmem:[%s1 + $0x8] sm:$0x3]
  %s18 = sld [smem:[#allocation2]]
  %v19 = vstv %s18
  %vm20 = vcmask 80896
  %v22 = vsel %vm20, %v15, 0
  %vm24 = vcmask 1041408
  %v26 = vsel %vm24, %v17, 0
  %28 = vmatprep.subr.mxu0 0.0
  %29 = vmatpush1.msra.mxu0 %v16
  %30 = vmatprep.subr.mxu0 0.0
  %31 = vmatpush1.msra.mxu0 %v26
  %32 = vmatprep.subr.mxu0 0.0
  %33 = vmatpush1.msra.mxu0 0.0
  %34 = vmatprep.subr.mxu0 0.0
  %35 = vmatpush1.msra.mxu0 0.0
  %36 = vmatprep.subr.mxu0 0.0
  %37 = vmatpush1.msra.mxu0 0.0
  %38 = vmatprep.subr.mxu0 0.0
  %39 = vmatpush1.msra.mxu0 0.0
  %40 = vmatprep.subr.mxu0 0.0
  %41 = vmatpush1.msra.mxu0 0.0
  %42 = vmatprep.subr.mxu0 0.0
  %43 = vmatpush1.msra.mxu0 0.0
  %44 = vmatprep.subr.mxu0 0.0
  %45 = vmatpush1.msra.mxu0 0.0
  %46 = vmatprep.subr.mxu0 0.0
  %47 = vmatpush1.msra.mxu0 0.0
  %48 = vmatprep.subr.mxu0 0.0
  %49 = vmatpush1.msra.mxu0 0.0
  %50 = vmatprep.subr.mxu0 0.0
  %51 = vmatpush1.msra.mxu0 0.0
  %52 = vmatprep.subr.mxu0 0.0
  %53 = vmatpush1.msra.mxu0 0.0
  %54 = vmatprep.subr.mxu0 0.0
  %55 = vmatpush1.msra.mxu0 0.0
  %56 = vmatprep.subr.mxu0 0.0
  %57 = vmatpush1.msra.mxu0 0.0
  %58 = vmatprep.subr.mxu0 0.0
  %59 = vmatpush1.msra.mxu0 0.0
  %60 = vmatprep.subr.mxu0 0.0
  %61 = vmatpush1.msra.mxu0 0.0
  %62 = vmatprep.subr.mxu0 0.0
  %63 = vmatpush1.msra.mxu0 0.0
  %64 = vmatprep.subr.mxu0 0.0
  %65 = vmatpush1.msra.mxu0 0.0
  %66 = vmatprep.subr.mxu0 0.0
  %67 = vmatpush1.msra.mxu0 0.0
  %68 = vmatprep.subr.mxu0 0.0
  %69 = vmatpush1.msra.mxu0 0.0
  %70 = vmatprep.subr.mxu0 0.0
  %71 = vmatpush1.msra.mxu0 0.0
  %72 = vmatprep.subr.mxu0 0.0
  %73 = vmatpush1.msra.mxu0 0.0
  %74 = vmatprep.subr.mxu0 0.0
  %75 = vmatpush1.msra.mxu0 0.0
  %76 = vmatprep.subr.mxu0 0.0
  %77 = vmatpush1.msra.mxu0 0.0
  %78 = vmatprep.subr.mxu0 0.0
  %79 = vmatpush1.msra.mxu0 0.0
  %80 = vmatprep.subr.mxu0 0.0
  %81 = vmatpush1.msra.mxu0 0.0
  %82 = vmatprep.subr.mxu0 0.0
  %83 = vmatpush1.msra.mxu0 0.0
  %84 = vmatprep.subr.mxu0 0.0
  %85 = vmatpush1.msra.mxu0 0.0
  %86 = vmatprep.subr.mxu0 0.0
  %87 = vmatpush1.msra.mxu0 0.0
  %88 = vmatprep.subr.mxu0 0.0
  %89 = vmatpush1.msra.mxu0 0.0
  %90 = vmatprep.subr.mxu0 0.0
  %91 = vmatpush1.msra.mxu0 0.0
  %92 = vmatprep.mubr.f32.mxu0 0.0
  %93 = vmatmul.mubr.f32.gmra.mrb[0].mxu0 %v22
  %v94 = vpop.f32.mrb[0].mxu0
  %v95 = vadd.f32 %v19, %v94
  %v96 = vpop.f32.mrb[0].mxu0
  %97 = vdwg.mxu0
  %vm98 = vcmask 7168
  %99 = vst.msk [vmem:[%s3] sm:$0xff] %vm98, %v95
  // Predicated region
  $region14: #{neural_network_forward.1} parent=0 // pred_check
    _
  $region15: #{neural_network_forward.1} parent=0 // pred_check_branch
    %101 = sbr.rel (0) target = $region17
  $region16: #{neural_network_forward.1} parent=0 // pred_region
    _
  $region17: #{neural_network_forward.1} parent=0 // pred_fallthru
    _
  // Predicated region
  $region18: #{neural_network_forward.1} parent=0 // pred_check
    _
  $region19: #{neural_network_forward.1} parent=0 // pred_check_branch
    %103 = sbr.rel (0) target = $region21
  $region20: #{neural_network_forward.1} parent=0 // pred_region
    _
  $region21: #{neural_network_forward.1} parent=0 // pred_fallthru
    _

</llo_original>
